<compile_context>
chip_gen: v7x
topology: tpu7x:2x2x1
jax: 0.10.0
libtpu: 0.0.40
codegen_flags: <defaults>
</compile_context>

<pallas_src>
import functools

import jax
import jax.numpy as jnp
from jax.experimental import pallas as pl
from jax.experimental.pallas import tpu as pltpu


def _gprompt_loss_kernel(emb_ref, cen_ref, lab_ref, out_ref, acc_ref, *,
                         n_valid, tile_n):
    i = pl.program_id(0)

    @pl.when(i == 0)
    def _():
        acc_ref[...] = jnp.zeros_like(acc_ref)

    eps = jnp.float32(1e-8)

    e = emb_ref[...].astype(jnp.float32)                        # (TN, D)
    c = cen_ref[...].astype(jnp.float32)                        # (C, D), pre-normalized * 1/tau

    # Un-normalized similarities, transposed to (C, TN): contract D of both
    # operands on the MXU so everything downstream is lane-dense over TN.
    sim_un = jax.lax.dot_general(
        c, e, (((1,), (1,)), ((), ())),
        preferred_element_type=jnp.float32)                     # (C, TN)

    # ||e||^2 per row via the MXU (ones-row contraction over D) instead of an
    # XLU lane-reduce; scale is applied after the matmul (saves a TNxD mul).
    ones_row = jnp.ones((1, e.shape[1]), jnp.float32)
    normsq = jax.lax.dot_general(
        ones_row, e * e, (((1,), (1,)), ((), ())),
        preferred_element_type=jnp.float32)                     # (1, TN)
    inv_norm = jax.lax.rsqrt(jnp.maximum(normsq, eps * eps))    # (1, TN)

    sim = sim_un * inv_norm                                     # (C, TN)

    # Stable log-sum-exp over the class (sublane) axis.
    m = jnp.max(sim, axis=0, keepdims=True)                               # (1, TN)
    lse = m + jnp.log(jnp.sum(jnp.exp(sim - m), axis=0, keepdims=True))   # (1, TN)

    # gather(1, labels) as a one-hot select against a class iota.
    labels = lab_ref[...]                                                 # (1, TN)
    class_ids = jax.lax.broadcasted_iota(jnp.int32, sim.shape, 0)         # (C, TN)
    sim_lab = jnp.sum(jnp.where(class_ids == labels, sim, 0.0),
                      axis=0, keepdims=True)                              # (1, TN)

    row_loss = lse - sim_lab                                              # (1, TN)

    # Mask columns past the true N (ragged last block over-reads the array).
    # Must stay after the transcendentals and before the accumulate so any
    # NaN/Inf from uninitialized padding lanes is replaced by 0.
    col = jax.lax.broadcasted_iota(jnp.int32, (1, tile_n), 1) + i * tile_n
    row_loss = jnp.where(col < n_valid, row_loss, 0.0)

    # Lane-wise vector accumulate (no per-step cross-lane reduction).
    acc_ref[...] += row_loss

    @pl.when(i == pl.num_programs(0) - 1)
    def _():
        total = jnp.sum(acc_ref[...], axis=1, keepdims=True)              # (1, 1)
        out_ref[...] = jnp.broadcast_to(total, (8, 128))


def gprompt_tuning_loss(embedding, center_embedding, labels, tau=0.1):
    """Pallas TPU implementation of Gprompt_tuning_loss.forward."""
    N, D = embedding.shape
    C, Dc = center_embedding.shape
    assert D == Dc

    eps = 1e-8
    inv_tau = 1.0 / float(tau)

    # Hoist center normalization out of the grid loop and fold in 1/tau.
    c32 = center_embedding.astype(jnp.float32)
    c_ss = jnp.sum(c32 * c32, axis=-1, keepdims=True)
    centers_n = c32 * (jax.lax.rsqrt(jnp.maximum(c_ss, eps * eps)) * inv_tau)

    # Size the N-tile by bytes: ~4 MiB of f32 intermediates per tile,
    # clamped to [128, 8192] rows and to the (128-rounded) array extent.
    target_f32_block_bytes = 4 * 1024 * 1024
    rows = max(1, target_f32_block_bytes // (4 * D))
    tile_n = max(128, min(8192, (rows // 128) * 128))
    tile_n = min(tile_n, 128 * pl.cdiv(N, 128))
    num_tiles = pl.cdiv(N, tile_n)

    # No full-array padding copy of the embedding: the last block over-runs
    # the array and is masked in-kernel.  Labels ride along as a tiny
    # lane-aligned (1, N) int32 block.
    lab = labels.astype(jnp.int32).reshape(1, N)

    kernel = functools.partial(_gprompt_loss_kernel, n_valid=N, tile_n=tile_n)

    itemsize = jnp.dtype(embedding.dtype).itemsize
    cost = pl.CostEstimate(
        flops=2 * N * D * (C + 1),
        transcendentals=N * (C + 2),
        bytes_accessed=N * D * itemsize + C * D * 4 + N * 4,
    )

    out = pl.pallas_call(
        kernel,
        out_shape=jax.ShapeDtypeStruct((8, 128), jnp.float32),
        grid=(num_tiles,),
        in_specs=[
            pl.BlockSpec((tile_n, D), lambda i: (i, 0)),   # streamed embedding tiles
            pl.BlockSpec((C, D), lambda i: (0, 0)),        # VMEM-resident centers
            pl.BlockSpec((1, tile_n), lambda i: (0, i)),   # labels, lane-aligned
        ],
        out_specs=pl.BlockSpec((8, 128), lambda i: (0, 0)),
        scratch_shapes=[pltpu.VMEM((1, tile_n), jnp.float32)],
        compiler_params=pltpu.CompilerParams(
            # Single reduction axis; the whole grid is one serial stream.
            # TODO(synk): add a leading CORE_PARALLEL axis to split N across
            # the two TensorCores on v7x.
            dimension_semantics=("arbitrary",),
            vmem_limit_bytes=48 * 1024 * 1024,
        ),
        cost_estimate=cost,
    )(embedding, centers_n, lab)

    return out[0, 0]


if __name__ == "__main__":
    key = jax.random.PRNGKey(0)
    k_emb, k_cen, k_lab = jax.random.split(key, 3)

    N, C, D = 8, 4, 32  # samples, classes, hidden dim
    embedding = jax.random.normal(k_emb, (N, D), dtype=jnp.float32)
    center_embedding = jax.random.normal(k_cen, (C, D), dtype=jnp.float32)
    labels = jax.random.randint(k_lab, (N,), 0, C, dtype=jnp.int32)

    tau = 0.1
    loss = gprompt_tuning_loss(embedding, center_embedding, labels, tau=tau)
    loss = jax.block_until_ready(loss)

    # Pure-JAX reference of the original PyTorch math.
    e = embedding / jnp.maximum(
        jnp.linalg.norm(embedding, axis=-1, keepdims=True), 1e-8)
    c = center_embedding / jnp.maximum(
        jnp.linalg.norm(center_embedding, axis=-1, keepdims=True), 1e-8)
    sim = (e @ c.T) / tau
    exp_sim = jnp.exp(sim)
    pos_neg = jnp.sum(exp_sim, axis=1, keepdims=True)
    pos = jnp.take_along_axis(exp_sim, labels.reshape(-1, 1), axis=1)
    ref = jnp.sum(-jnp.log(pos / pos_neg))

    assert jnp.allclose(loss, ref, rtol=1e-3, atol=1e-3), (loss, ref)
    print("KERNEL_OK")
</pallas_src>

<mosaic_0001>
module attributes {stable_mosaic.version = 11 : i64} {
  func.func @_gprompt_loss_kernel(%arg0: i32, %arg1: memref<128x32xf32, #tpu.memory_space<vmem>>, %arg2: memref<4x32xf32, #tpu.memory_space<vmem>>, %arg3: memref<1x128xi32, #tpu.memory_space<vmem>>, %arg4: memref<8x128xf32, #tpu.memory_space<vmem>>, %arg5: memref<1x128xf32, #tpu.memory_space<vmem>>) attributes {dimension_semantics = [#tpu.dimension_semantics<arbitrary>], iteration_bounds = array<i64: 1>, scalar_prefetch = 0 : i64, scratch_operands = 1 : i64, tpu.core_type = #tpu.core_type<tc>, window_params = [{transform_indices = @transform_0, window_bounds = array<i64: 128, 32>}, {pipeline_mode = #tpu.pipeline_mode<synchronous>, transform_indices = @transform_1, window_bounds = array<i64: 4, 32>}, {transform_indices = @transform_2, window_bounds = array<i64: 1, 128>}, {pipeline_mode = #tpu.pipeline_mode<synchronous>, transform_indices = @transform_3, window_bounds = array<i64: 8, 128>}]} {
    %c0_i32 = arith.constant 0 : i32
    %0 = arith.cmpi eq, %arg0, %c0_i32 : i32
    %1 = arith.extui %0 : i1 to i32
    %c0_i32_0 = arith.constant 0 : i32
    %2 = arith.cmpi ne, %1, %c0_i32_0 : i32
    scf.if %2 {
      %cst_21 = arith.constant 0.000000e+00 : f32
      %47 = vector.broadcast %cst_21 : f32 to vector<1x128xf32>
      %c0_22 = arith.constant 0 : index
      %c0_23 = arith.constant 0 : index
      %48 = vector.load %arg5[%c0_22, %c0_23] : memref<1x128xf32, #tpu.memory_space<vmem>>, vector<1x128xf32>
      tpu.vector_store %arg5[%c0_22, %c0_23], %47 {strides = array<i32>} : memref<1x128xf32, #tpu.memory_space<vmem>>, vector<1x128xf32>,
    } else {
    }
    %c0 = arith.constant 0 : index
    %c0_1 = arith.constant 0 : index
    %3 = vector.load %arg1[%c0, %c0_1] : memref<128x32xf32, #tpu.memory_space<vmem>>, vector<128x32xf32>
    %c0_2 = arith.constant 0 : index
    %c0_3 = arith.constant 0 : index
    %4 = vector.load %arg2[%c0_2, %c0_3] : memref<4x32xf32, #tpu.memory_space<vmem>>, vector<4x32xf32>
    %cst = arith.constant dense<0.000000e+00> : vector<4x128xf32>
    %5 = tpu.matmul %4, %3, %cst {dimension_numbers = #tpu.dot_dimension_numbers<[1], [1], [0], [0], [0, 0, 1, 0], [], []>} : vector<4x32xf32>, vector<128x32xf32>, vector<4x128xf32> -> vector<4x128xf32>
    %cst_4 = arith.constant 1.000000e+00 : f32
    %6 = vector.broadcast %cst_4 : f32 to vector<1x32xf32>
    %7 = arith.mulf %3, %3 : vector<128x32xf32>
    %cst_5 = arith.constant dense<0.000000e+00> : vector<1x128xf32>
    %8 = tpu.matmul %6, %7, %cst_5 {dimension_numbers = #tpu.dot_dimension_numbers<[1], [1], [0], [0], [0, 0, 1, 0], [], []>} : vector<1x32xf32>, vector<128x32xf32>, vector<1x128xf32> -> vector<1x128xf32>
    %cst_6 = arith.constant 9.99999993E-9 : f32
    %cst_7 = arith.constant 9.99999993E-9 : f32
    %9 = arith.mulf %cst_6, %cst_7 : f32
    %10 = vector.broadcast %9 : f32 to vector<1x128xf32>
    %11 = arith.maximumf %8, %10 : vector<1x128xf32>
    %12 = math.rsqrt %11 : vector<1x128xf32>
    %13 = vector.broadcast %12 : vector<1x128xf32> to vector<4x128xf32>
    %14 = arith.mulf %5, %13 : vector<4x128xf32>
    %cst_8 = arith.constant dense<0xFF800000> : vector<128xf32>
    %15 = vector.multi_reduction <maximumf>, %14, %cst_8 [0] : vector<4x128xf32> to vector<128xf32>
    %16 = vector.shape_cast %15 : vector<128xf32> to vector<1x128xf32>
    %17 = vector.broadcast %16 : vector<1x128xf32> to vector<4x128xf32>
    %18 = arith.subf %14, %17 : vector<4x128xf32>
    %19 = math.exp %18 : vector<4x128xf32>
    %cst_9 = arith.constant dense<0.000000e+00> : vector<128xf32>
    %20 = vector.multi_reduction <add>, %19, %cst_9 [0] : vector<4x128xf32> to vector<128xf32>
    %21 = vector.shape_cast %20 : vector<128xf32> to vector<1x128xf32>
    %22 = math.log %21 : vector<1x128xf32>
    %23 = arith.addf %16, %22 : vector<1x128xf32>
    %c0_10 = arith.constant 0 : index
    %c0_11 = arith.constant 0 : index
    %24 = vector.load %arg3[%c0_10, %c0_11] : memref<1x128xi32, #tpu.memory_space<vmem>>, vector<1x128xi32>
    %25 = tpu.iota {dimensions = array<i32: 0>} : vector<4x128xi32>
    %26 = vector.broadcast %24 : vector<1x128xi32> to vector<4x128xi32>
    %27 = arith.cmpi eq, %25, %26 : vector<4x128xi32>
    %cst_12 = arith.constant 0.000000e+00 : f32
    %28 = vector.broadcast %cst_12 : f32 to vector<4x128xf32>
    %29 = arith.select %27, %14, %28 : vector<4x128xi1>, vector<4x128xf32>
    %cst_13 = arith.constant dense<0.000000e+00> : vector<128xf32>
    %30 = vector.multi_reduction <add>, %29, %cst_13 [0] : vector<4x128xf32> to vector<128xf32>
    %31 = vector.shape_cast %30 : vector<128xf32> to vector<1x128xf32>
    %32 = arith.subf %23, %31 : vector<1x128xf32>
    %33 = tpu.iota {dimensions = array<i32: 1>} : vector<1x128xi32>
    %c128_i32 = arith.constant 128 : i32
    %34 = arith.muli %arg0, %c128_i32 : i32
    %35 = vector.broadcast %34 : i32 to vector<1x128xi32>
    %36 = arith.addi %33, %35 : vector<1x128xi32>
    %c8_i32 = arith.constant 8 : i32
    %37 = vector.broadcast %c8_i32 : i32 to vector<1x128xi32>
    %38 = arith.cmpi slt, %36, %37 : vector<1x128xi32>
    %cst_14 = arith.constant 0.000000e+00 : f32
    %39 = vector.broadcast %cst_14 : f32 to vector<1x128xf32>
    %40 = arith.select %38, %32, %39 : vector<1x128xi1>, vector<1x128xf32>
    %c0_15 = arith.constant 0 : index
    %c0_16 = arith.constant 0 : index
    %41 = vector.load %arg5[%c0_15, %c0_16] : memref<1x128xf32, #tpu.memory_space<vmem>>, vector<1x128xf32>
    %42 = arith.addf %41, %40 : vector<1x128xf32>
    %c0_17 = arith.constant 0 : index
    %c0_18 = arith.constant 0 : index
    %43 = vector.load %arg5[%c0_17, %c0_18] : memref<1x128xf32, #tpu.memory_space<vmem>>, vector<1x128xf32>
    tpu.vector_store %arg5[%c0_17, %c0_18], %42 {strides = array<i32>} : memref<1x128xf32, #tpu.memory_space<vmem>>, vector<1x128xf32>,
    %c0_i32_19 = arith.constant 0 : i32
    %44 = arith.cmpi eq, %arg0, %c0_i32_19 : i32
    %45 = arith.extui %44 : i1 to i32
    %c0_i32_20 = arith.constant 0 : i32
    %46 = arith.cmpi ne, %45, %c0_i32_20 : i32
    scf.if %46 {
      %c0_21 = arith.constant 0 : index
      %c0_22 = arith.constant 0 : index
      %47 = vector.load %arg5[%c0_21, %c0_22] : memref<1x128xf32, #tpu.memory_space<vmem>>, vector<1x128xf32>
      %cst_23 = arith.constant dense<0.000000e+00> : vector<1xf32>
      %48 = vector.multi_reduction <add>, %47, %cst_23 [1] : vector<1x128xf32> to vector<1xf32>
      %49 = vector.shape_cast %48 : vector<1xf32> to vector<1x1xf32>
      %50 = vector.shape_cast %49 : vector<1x1xf32> to vector<1x1xf32>
      %51 = vector.broadcast %50 : vector<1x1xf32> to vector<8x128xf32>
      %c0_24 = arith.constant 0 : index
      %c0_25 = arith.constant 0 : index
      %52 = vector.load %arg4[%c0_24, %c0_25] : memref<8x128xf32, #tpu.memory_space<vmem>>, vector<8x128xf32>
      tpu.vector_store %arg4[%c0_24, %c0_25], %51 {strides = array<i32>} : memref<8x128xf32, #tpu.memory_space<vmem>>, vector<8x128xf32>,
    } else {
    }
    return
  }
  func.func @transform_0(%arg0: i32) -> (i32, i32) {
    %c0_i32 = arith.constant 0 : i32
    %c0_i32_0 = arith.constant 0 : i32
    return %arg0, %c0_i32 : i32, i32
  }
  func.func @transform_1(%arg0: i32) -> (i32, i32) {
    %c0_i32 = arith.constant 0 : i32
    %c0_i32_0 = arith.constant 0 : i32
    %c0_i32_1 = arith.constant 0 : i32
    return %c0_i32, %c0_i32_0 : i32, i32
  }
  func.func @transform_2(%arg0: i32) -> (i32, i32) {
    %c0_i32 = arith.constant 0 : i32
    %c0_i32_0 = arith.constant 0 : i32
    return %c0_i32, %arg0 : i32, i32
  }
  func.func @transform_3(%arg0: i32) -> (i32, i32) {
    %c0_i32 = arith.constant 0 : i32
    %c0_i32_0 = arith.constant 0 : i32
    %c0_i32_1 = arith.constant 0 : i32
    return %c0_i32, %c0_i32_0 : i32, i32
  }
}

</mosaic_0001>

<llo_original>
// kernel: tpu_custom_call.1
$region0: #{tpu_custom_call.1}
  #allocation0 [shape = 'u32[]', space=smem, size = 0x4, offset = 0x4, fixed_abs, tag = 'smem constant byte address 0x4 - core index']
  #allocation1 [shape = 'u32[144,128]{1,0:T(1,128)}', space=vmem, size = 0x12000, scoped, tag = 'internal scratch']
  #allocation2 [shape = 'f32[1,128]{1,0:T(1,128)}', space=vmem, size = 0x200, scoped, tag = 'scratch operand']
  %s0 = inlined_call_operand.hbm [shape: f32[8,32], index: 0, kind: input, shape index: {}]
  %s1 = inlined_call_operand.hbm [shape: f32[4,32], index: 1, kind: input, shape index: {}]
  %s2 = inlined_call_operand.vmem [shape: s32[1,8], index: 2, kind: input, shape index: {}]
  %s3 = inlined_call_operand.hbm [shape: f32[8,128], index: 3, kind: output, shape index: {}]
  %s4 = sld [smem:[#allocation0]]
  $region38: #{tpu_custom_call.1} parent=0
    _
  %s6 = ssub.s32 1, %s4
  %s7 = scalar_select 0, %s6, %s4
  $region1: #{tpu_custom_call.1} parent=0
    #allocation3 [shape = 'u8[65536]{0}', space=vmem, size = 0x10000, scoped, tag = 'input window, operand 0, single buffered']
    #allocation4 [shape = 's32[1]{0}', space=sflag, size = 0x4, scoped, tag = 'scoped memory for tpu_custom_call.1']
    #allocation5 [shape = 's32[1]{0}', space=sflag, size = 0x4, scoped, tag = 'scoped memory for tpu_custom_call.1']
    #allocation6 [shape = 'u8[2048]{0}', space=vmem, size = 0x800, scoped, tag = 'input window, operand 1, single buffered']
    #allocation7 [shape = 's32[1]{0}', space=sflag, size = 0x4, scoped, tag = 'scoped memory for tpu_custom_call.1']
    #allocation8 [shape = 'u8[4096]{0}', space=vmem, size = 0x1000, scoped, tag = 'output window, operand 0, single buffered']
    %8 = vsyncpa [#allocation4], 0
    %9 = vsyncpa [#allocation7], 0
    %10 = vsyncpa [#allocation5], 0
    // Predicated region
    $region2: #{tpu_custom_call.1} parent=1 // pred_check
      _
    $region3: #{tpu_custom_call.1} parent=1 // pred_check_branch
      %12 = sbr.rel (0) target = $region5
    $region4: #{tpu_custom_call.1} parent=1 // pred_region
      %s14 = ssub.s32 2048, 128
      %15 = vsyncadd [#allocation4], %s14
      %s16 = sshll.u32 [#allocation3], 4
      %s17 = int_to_ptr.vmem [resolvable:$true] %s16
      %22 = dma.hbm_to_vmem [thread:$0]  %s0, 128, %s17, [#allocation4], 128, 128, 8
    $region5: #{tpu_custom_call.1} parent=1 // pred_fallthru
      _
    // Predicated region
    $region6: #{tpu_custom_call.1} parent=1 // pred_check
      _
    $region7: #{tpu_custom_call.1} parent=1 // pred_check_branch
      %24 = sbr.rel (0) target = $region9
    $region8: #{tpu_custom_call.1} parent=1 // pred_region
      %s26 = ssub.s32 64, 64
      %27 = vsyncadd [#allocation7], %s26
      %s29 = sshll.u32 [#allocation6], 4
      %s30 = int_to_ptr.vmem [resolvable:$true] %s29
      %32 = dma.hbm_to_vmem [thread:$0]  %s1, 64, %s30, [#allocation7]
    $region9: #{tpu_custom_call.1} parent=1 // pred_fallthru
      _
    // Predicated region
    $region10: #{tpu_custom_call.1} parent=1 // pred_check
      _
    $region11: #{tpu_custom_call.1} parent=1 // pred_check_branch
      %34 = sbr.rel (0) target = $region13
    $region12: #{tpu_custom_call.1} parent=1 // pred_region
      _
    $region13: #{tpu_custom_call.1} parent=1 // pred_fallthru
      _
    // Predicated region
    $region14: #{tpu_custom_call.1} parent=1 // pred_check
      _
    $region15: #{tpu_custom_call.1} parent=1 // pred_check_branch
      %36 = sbr.rel (0) target = $region17
    $region16: #{tpu_custom_call.1} parent=1 // pred_region
      %37 = dma.done [#allocation4], 2048
    $region17: #{tpu_custom_call.1} parent=1 // pred_fallthru
      _
    // Predicated region
    $region18: #{tpu_custom_call.1} parent=1 // pred_check
      _
    $region19: #{tpu_custom_call.1} parent=1 // pred_check_branch
      %39 = sbr.rel (0) target = $region21
    $region20: #{tpu_custom_call.1} parent=1 // pred_region
      %40 = dma.done [#allocation7], 64
    $region21: #{tpu_custom_call.1} parent=1 // pred_fallthru
      _
    %p41 = scmp.eq.s32.totalorder 0, 0
    // Predicated region
    $region22: #{tpu_custom_call.1} parent=1 // pred_check
      %p42 = pneg %p41
    $region23: #{tpu_custom_call.1} parent=1 // pred_check_branch
      %44 = sbr.rel (%p42) target = $region25
    $region24: #{tpu_custom_call.1} parent=1 // pred_region
      %45 = vst [vmem:[#allocation2] sm:$0x1] 0.0
    $region25: #{tpu_custom_call.1} parent=1 // pred_fallthru
      _
    %v46 = vld [vmem:[#allocation3] sm:$0xff]
    %v47 = vld [vmem:[#allocation3 + $0x8] sm:$0xff]
    %v48 = vld [vmem:[#allocation3 + $0x10] sm:$0xff]
    %v49 = vld [vmem:[#allocation3 + $0x18] sm:$0xff]
    %v50 = vld [vmem:[#allocation3 + $0x20] sm:$0xff]
    %v51 = vld [vmem:[#allocation3 + $0x28] sm:$0xff]
    %v52 = vld [vmem:[#allocation3 + $0x30] sm:$0xff]
    %v53 = vld [vmem:[#allocation3 + $0x38] sm:$0xff]
    %v54 = vld [vmem:[#allocation3 + $0x40] sm:$0xff]
    %v55 = vld [vmem:[#allocation3 + $0x48] sm:$0xff]
    %v56 = vld [vmem:[#allocation3 + $0x50] sm:$0xff]
    %v57 = vld [vmem:[#allocation3 + $0x58] sm:$0xff]
    %v58 = vld [vmem:[#allocation3 + $0x60] sm:$0xff]
    %v59 = vld [vmem:[#allocation3 + $0x68] sm:$0xff]
    %v60 = vld [vmem:[#allocation3 + $0x70] sm:$0xff]
    %v61 = vld [vmem:[#allocation3 + $0x78] sm:$0xff]
    %v62 = vld [vmem:[#allocation6] sm:$0xf]
    %vm63 = vcmask 261120
    %v65 = vsel %vm63, %v62, 0
    %v68 = vsel %vm63, %v46, 0
    %v71 = vsel %vm63, %v47, 0
    %v74 = vsel %vm63, %v48, 0
    %v77 = vsel %vm63, %v49, 0
    %v80 = vsel %vm63, %v50, 0
    %v83 = vsel %vm63, %v51, 0
    %v86 = vsel %vm63, %v52, 0
    %v89 = vsel %vm63, %v53, 0
    %v92 = vsel %vm63, %v54, 0
    %v95 = vsel %vm63, %v55, 0
    %v98 = vsel %vm63, %v56, 0
    %v101 = vsel %vm63, %v57, 0
    %v104 = vsel %vm63, %v58, 0
    %v107 = vsel %vm63, %v59, 0
    %v110 = vsel %vm63, %v60, 0
    %v113 = vsel %vm63, %v61, 0
    %115 = vmatprep.subr.mxu0 0.0
    %116 = vmatpush1.xpose.msra.mxu0 %v68
    %117 = vmatprep.subr.mxu0 0.0
    %118 = vmatpush1.xpose.msra.mxu0 %v71
    %119 = vmatprep.subr.mxu0 0.0
    %120 = vmatpush1.xpose.msra.mxu0 %v74
    %121 = vmatprep.subr.mxu0 0.0
    %122 = vmatpush1.xpose.msra.mxu0 %v77
    %123 = vmatprep.subr.mxu0 0.0
    %124 = vmatpush1.xpose.msra.mxu0 %v80
    %125 = vmatprep.subr.mxu0 0.0
    %126 = vmatpush1.xpose.msra.mxu0 %v83
    %127 = vmatprep.subr.mxu0 0.0
    %128 = vmatpush1.xpose.msra.mxu0 %v86
    %129 = vmatprep.subr.mxu0 0.0
    %130 = vmatpush1.xpose.msra.mxu0 %v89
    %131 = vmatprep.subr.mxu0 0.0
    %132 = vmatpush1.xpose.msra.mxu0 %v92
    %133 = vmatprep.subr.mxu0 0.0
    %134 = vmatpush1.xpose.msra.mxu0 %v95
    %135 = vmatprep.subr.mxu0 0.0
    %136 = vmatpush1.xpose.msra.mxu0 %v98
    %137 = vmatprep.subr.mxu0 0.0
    %138 = vmatpush1.xpose.msra.mxu0 %v101
    %139 = vmatprep.subr.mxu0 0.0
    %140 = vmatpush1.xpose.msra.mxu0 %v104
    %141 = vmatprep.subr.mxu0 0.0
    %142 = vmatpush1.xpose.msra.mxu0 %v107
    %143 = vmatprep.subr.mxu0 0.0
    %144 = vmatpush1.xpose.msra.mxu0 %v110
    %145 = vmatprep.subr.mxu0 0.0
    %146 = vmatpush1.xpose.msra.mxu0 %v113
    %147 = vmatprep.subr.mxu0 0.0
    %148 = vmatpush1.xpose.msra.mxu0 0.0
    %149 = vmatprep.subr.mxu0 0.0
    %150 = vmatpush1.xpose.msra.mxu0 0.0
    %151 = vmatprep.subr.mxu0 0.0
    %152 = vmatpush1.xpose.msra.mxu0 0.0
    %153 = vmatprep.subr.mxu0 0.0
    %154 = vmatpush1.xpose.msra.mxu0 0.0
    %155 = vmatprep.subr.mxu0 0.0
    %156 = vmatpush1.xpose.msra.mxu0 0.0
    %157 = vmatprep.subr.mxu0 0.0
    %158 = vmatpush1.xpose.msra.mxu0 0.0
    %159 = vmatprep.subr.mxu0 0.0
    %160 = vmatpush1.xpose.msra.mxu0 0.0
    %161 = vmatprep.subr.mxu0 0.0
    %162 = vmatpush1.xpose.msra.mxu0 0.0
    %163 = vmatprep.subr.mxu0 0.0
    %164 = vmatpush1.xpose.msra.mxu0 0.0
    %165 = vmatprep.subr.mxu0 0.0
    %166 = vmatpush1.xpose.msra.mxu0 0.0
    %167 = vmatprep.subr.mxu0 0.0
    %168 = vmatpush1.xpose.msra.mxu0 0.0
    %169 = vmatprep.subr.mxu0 0.0
    %170 = vmatpush1.xpose.msra.mxu0 0.0
    %171 = vmatprep.subr.mxu0 0.0
    %172 = vmatpush1.xpose.msra.mxu0 0.0
    %173 = vmatprep.subr.mxu0 0.0
    %174 = vmatpush1.xpose.msra.mxu0 0.0
    %175 = vmatprep.subr.mxu0 0.0
    %176 = vmatpush1.xpose.msra.mxu0 0.0
    %177 = vmatprep.subr.mxu0 0.0
    %178 = vmatpush1.xpose.msra.mxu0 0.0
    %179 = vmatprep.mubr.f32.mxu0 0.0
    %180 = vmatmul.mubr.f32.gmra.mrb[0].mxu0 %v65
    %v181 = vpop.f32.mrb[0].mxu0
    %v182 = vadd.f32 0.0, %v181
    %v183 = vpop.f32.mrb[0].mxu0
    %184 = vdwg.mxu0
    %v185 = vmul.f32 %v46, %v46
    %v186 = vmul.f32 %v47, %v47
    %v187 = vmul.f32 %v48, %v48
    %v188 = vmul.f32 %v49, %v49
    %v189 = vmul.f32 %v50, %v50
    %v190 = vmul.f32 %v51, %v51
    %v191 = vmul.f32 %v52, %v52
    %v192 = vmul.f32 %v53, %v53
    %v193 = vmul.f32 %v54, %v54
    %v194 = vmul.f32 %v55, %v55
    %v195 = vmul.f32 %v56, %v56
    %v196 = vmul.f32 %v57, %v57
    %v197 = vmul.f32 %v58, %v58
    %v198 = vmul.f32 %v59, %v59
    %v199 = vmul.f32 %v60, %v60
    %v200 = vmul.f32 %v61, %v61
    %v202 = vsel %vm63, 1.0, 0
    %v205 = vsel %vm63, %v185, 0
    %v208 = vsel %vm63, %v186, 0
    %v211 = vsel %vm63, %v187, 0
    %v214 = vsel %vm63, %v188, 0
    %v217 = vsel %vm63, %v189, 0
    %v220 = vsel %vm63, %v190, 0
    %v223 = vsel %vm63, %v191, 0
    %v226 = vsel %vm63, %v192, 0
    %v229 = vsel %vm63, %v193, 0
    %v232 = vsel %vm63, %v194, 0
    %v235 = vsel %vm63, %v195, 0
    %v238 = vsel %vm63, %v196, 0
    %v241 = vsel %vm63, %v197, 0
    %v244 = vsel %vm63, %v198, 0
    %v247 = vsel %vm63, %v199, 0
    %v250 = vsel %vm63, %v200, 0
    %252 = vmatprep.subr.mxu0 0.0
    %253 = vmatpush1.xpose.msra.mxu0 %v205
    %254 = vmatprep.subr.mxu0 0.0
    %255 = vmatpush1.xpose.msra.mxu0 %v208
    %256 = vmatprep.subr.mxu0 0.0
    %257 = vmatpush1.xpose.msra.mxu0 %v211
    %258 = vmatprep.subr.mxu0 0.0
    %259 = vmatpush1.xpose.msra.mxu0 %v214
    %260 = vmatprep.subr.mxu0 0.0
    %261 = vmatpush1.xpose.msra.mxu0 %v217
    %262 = vmatprep.subr.mxu0 0.0
    %263 = vmatpush1.xpose.msra.mxu0 %v220
    %264 = vmatprep.subr.mxu0 0.0
    %265 = vmatpush1.xpose.msra.mxu0 %v223
    %266 = vmatprep.subr.mxu0 0.0
    %267 = vmatpush1.xpose.msra.mxu0 %v226
    %268 = vmatprep.subr.mxu0 0.0
    %269 = vmatpush1.xpose.msra.mxu0 %v229
    %270 = vmatprep.subr.mxu0 0.0
    %271 = vmatpush1.xpose.msra.mxu0 %v232
    %272 = vmatprep.subr.mxu0 0.0
    %273 = vmatpush1.xpose.msra.mxu0 %v235
    %274 = vmatprep.subr.mxu0 0.0
    %275 = vmatpush1.xpose.msra.mxu0 %v238
    %276 = vmatprep.subr.mxu0 0.0
    %277 = vmatpush1.xpose.msra.mxu0 %v241
    %278 = vmatprep.subr.mxu0 0.0
    %279 = vmatpush1.xpose.msra.mxu0 %v244
    %280 = vmatprep.subr.mxu0 0.0
    %281 = vmatpush1.xpose.msra.mxu0 %v247
    %282 = vmatprep.subr.mxu0 0.0
    %283 = vmatpush1.xpose.msra.mxu0 %v250
    %284 = vmatprep.subr.mxu0 0.0
    %285 = vmatpush1.xpose.msra.mxu0 0.0
    %286 = vmatprep.subr.mxu0 0.0
    %287 = vmatpush1.xpose.msra.mxu0 0.0
    %288 = vmatprep.subr.mxu0 0.0
    %289 = vmatpush1.xpose.msra.mxu0 0.0
    %290 = vmatprep.subr.mxu0 0.0
    %291 = vmatpush1.xpose.msra.mxu0 0.0
    %292 = vmatprep.subr.mxu0 0.0
    %293 = vmatpush1.xpose.msra.mxu0 0.0
    %294 = vmatprep.subr.mxu0 0.0
    %295 = vmatpush1.xpose.msra.mxu0 0.0
    %296 = vmatprep.subr.mxu0 0.0
    %297 = vmatpush1.xpose.msra.mxu0 0.0
    %298 = vmatprep.subr.mxu0 0.0
    %299 = vmatpush1.xpose.msra.mxu0 0.0
    %300 = vmatprep.subr.mxu0 0.0
    %301 = vmatpush1.xpose.msra.mxu0 0.0
    %302 = vmatprep.subr.mxu0 0.0
    %303 = vmatpush1.xpose.msra.mxu0 0.0
    %304 = vmatprep.subr.mxu0 0.0
    %305 = vmatpush1.xpose.msra.mxu0 0.0
    %306 = vmatprep.subr.mxu0 0.0
    %307 = vmatpush1.xpose.msra.mxu0 0.0
    %308 = vmatprep.subr.mxu0 0.0
    %309 = vmatpush1.xpose.msra.mxu0 0.0
    %310 = vmatprep.subr.mxu0 0.0
    %311 = vmatpush1.xpose.msra.mxu0 0.0
    %312 = vmatprep.subr.mxu0 0.0
    %313 = vmatpush1.xpose.msra.mxu0 0.0
    %314 = vmatprep.subr.mxu0 0.0
    %315 = vmatpush1.xpose.msra.mxu0 0.0
    %316 = vmatprep.mubr.f32.mxu0 0.0
    %317 = vmatmul.mubr.f32.gmra.mrb[0].mxu0 %v202
    %v318 = vpop.f32.mrb[0].mxu0
    %v319 = vadd.f32 0.0, %v318
    %v320 = vpop.f32.mrb[0].mxu0
    %321 = vdwg.mxu0
    %v322 = vmax.f32 %v319, 1e-16
    %v323 = vrsqrt.pop %v322
    %v324 = vlaneseq
    %v325 = vshrl.u32 %v324, 7
    %v326 = vsub.s32 0, %v325
    %v327 = vrot.slane %v323, %v326
    %v328 = vmul.f32 %v182, %v327
    %vm329 = vcmask 1043456
    %v330 = vsel %vm329, %v328, -inf
    %v331 = vrot.slane %v330, 4
    %v332 = vmax.f32 %v330, %v331
    %v333 = vrot.slane %v332, 2
    %v334 = vmax.f32 %v332, %v333
    %v335 = vrot.slane %v334, 1
    %v336 = vmax.f32 %v334, %v335
    %v337 = vsub.f32 %v328, %v336
    %v338 = vmul.f32 %v337, 1.442695
    %v339 = vpow.pop %v338
    %v340 = vsel %vm329, %v339, 0.0
    %v341 = vrot.slane %v340, 4
    %v342 = vadd.f32 %v340, %v341
    %v343 = vrot.slane %v342, 2
    %v344 = vadd.f32 %v342, %v343
    %v345 = vrot.slane %v344, 1
    %v346 = vadd.f32 %v344, %v345
    %v347 = vlog2.pop %v346
    %v348 = vmul.f32 %v347, 0.6931472
    %v349 = vadd.f32 %v336, %v348
    %v350 = vld [vmem:[%s2] sm:$0x1]
    %v351 = vlaneseq
    %v352 = vshrl.u32 %v351, 7
    %v353 = vlaneseq
    %v354 = vshrl.u32 %v353, 7
    %v355 = vsub.s32 0, %v354
    %v356 = vrot.slane %v350, %v355
    %vm357 = vcmp.eq.s32.totalorder %v352, %v356
    %v358 = vsel %vm357, %v328, 0.0
    %v359 = vsel %vm329, %v358, 0.0
    %v360 = vrot.slane %v359, 4
    %v361 = vadd.f32 %v359, %v360
    %v362 = vrot.slane %v361, 2
    %v363 = vadd.f32 %v361, %v362
    %v364 = vrot.slane %v363, 1
    %v365 = vadd.f32 %v363, %v364
    %v366 = vsub.f32 %v349, %v365
    %v367 = vlaneseq
    %v368 = vand.u32 %v367, 127
    %s369 = smul.u32 0, 128
    %v370 = vstv %s369
    %v371 = vadd.s32 %v368, %v370
    %vm372 = vcmp.lt.s32.totalorder %v371, 8
    %v373 = vsel %vm372, %v366, 0.0
    %v374 = vld [vmem:[#allocation2] sm:$0x1]
    %v375 = vadd.f32 %v374, %v373
    %376 = vst [vmem:[#allocation2] sm:$0x1] %v375
    // Predicated region
    $region26: #{tpu_custom_call.1} parent=1 // pred_check
      %p377 = pneg %p41
    $region27: #{tpu_custom_call.1} parent=1 // pred_check_branch
      %379 = sbr.rel (%p377) target = $region29
    $region28: #{tpu_custom_call.1} parent=1 // pred_region
      %v380 = vld [vmem:[#allocation2] sm:$0x1]
      %vm381 = vcmask 1040384
      %v382 = vsel %vm381, %v380, 0.0
      %383 = vadd.xlane.f32.xlu0 %v382
      %v384 = vpop.xlane.xlu0 %383
      %v385 = vlaneseq
      %v386 = vshrl.u32 %v385, 7
      %v387 = vsub.s32 0, %v386
      %v388 = vrot.slane %v384, %v387
      %389 = vst [vmem:[#allocation8] sm:$0xff] %v388
    $region29: #{tpu_custom_call.1} parent=1 // pred_fallthru
      _
    // Predicated region
    $region30: #{tpu_custom_call.1} parent=1 // pred_check
      _
    $region31: #{tpu_custom_call.1} parent=1 // pred_check_branch
      %391 = sbr.rel (0) target = $region33
    $region32: #{tpu_custom_call.1} parent=1 // pred_region
      %s393 = ssub.s32 128, 128
      %394 = vsyncadd [#allocation5], %s393
      %s396 = sshll.u32 [#allocation8], 4
      %s397 = int_to_ptr.vmem [resolvable:$true] %s396
      %399 = dma.vmem_to_hbm [thread:$0]  %s397, 128, %s3, [#allocation5]
    $region33: #{tpu_custom_call.1} parent=1 // pred_fallthru
      _
    // Predicated region
    $region34: #{tpu_custom_call.1} parent=1 // pred_check
      _
    $region35: #{tpu_custom_call.1} parent=1 // pred_check_branch
      %401 = sbr.rel (0) target = $region37
    $region36: #{tpu_custom_call.1} parent=1 // pred_region
      %402 = dma.done [#allocation5], 128
    $region37: #{tpu_custom_call.1} parent=1 // pred_fallthru
      _
    %403 = vsyncpa [#allocation4], 1
    %404 = vsyncpa [#allocation7], 1
    %405 = vsyncpa [#allocation5], 1

</llo_original>
